<compile_context>
chip_gen: v5e
topology: v5e:2x2
jax: 0.10.0
libtpu: 0.0.40
codegen_flags: <defaults>
</compile_context>

<pallas_src>
import jax
import jax.numpy as jnp
import numpy as np
from jax.experimental import pallas as pl
from jax.experimental.pallas import tpu as pltpu

_NEG_BIG = -1e30  # finite "minus infinity" for masked lanes (avoids inf-inf NaNs)


def _round_up(x, m):
    return ((x + m - 1) // m) * m


# ---------------------------------------------------------------------------
# Kernel: one batch tile -> 3 packed partial sums (ce, sel*w, w).
# ---------------------------------------------------------------------------
def _make_selce_kernel(num_classes, batch_size, tile_rows):
    def kernel(x_ref, xt_ref, w_ref, out_ref):
        # Native-dtype loads, f32 compute.
        x = x_ref[...].astype(jnp.float32)          # (tm, C+1) raw inputs tile
        xt = xt_ref[...].astype(jnp.float32)        # (tm, 1)   target logit
        w = w_ref[...].astype(jnp.float32)          # (tm, 1)   weight[target] (1 if unweighted)

        # Lane mask: lanes < C are class logits, lane C is the selection score.
        lane = jax.lax.broadcasted_iota(jnp.int32, x.shape, 1)
        is_cls = lane < num_classes
        logits = jnp.where(is_cls, x, jnp.float32(_NEG_BIG))
        sel = jnp.sum(jnp.where(is_cls, 0.0, x), axis=-1, keepdims=True)   # column C

        # Stable log-softmax pieces; log_probs never materialized over (tm, C+1).
        m = jnp.max(logits, axis=-1, keepdims=True)
        lse = jnp.log(jnp.sum(jnp.exp(logits - m), axis=-1, keepdims=True))
        logp_t = (xt - m) - lse                                             # (tm, 1)

        # Row mask for the (possibly partial) last tile: rows >= B contribute 0.
        row = (pl.program_id(0) * tile_rows
               + jax.lax.broadcasted_iota(jnp.int32, (tile_rows, 1), 0))
        valid = row < batch_size

        ce_i = jnp.where(valid, -logp_t * sel * w, 0.0)
        selw_i = jnp.where(valid, sel * w, 0.0)
        w_i = jnp.where(valid, w, 0.0)

        s_ce = jnp.sum(ce_i)
        s_selw = jnp.sum(selw_i)
        s_w = jnp.sum(w_i)

        # Pack the 3 scalars into one lane-dense (1, 1, 128) block -> single
        # unmasked output store / DMA per grid step.
        out_lane = jax.lax.broadcasted_iota(jnp.int32, (1, 128), 1)
        packed = jnp.where(out_lane == 0, s_ce,
                 jnp.where(out_lane == 1, s_selw,
                 jnp.where(out_lane == 2, s_w, 0.0)))
        out_ref[...] = packed.reshape(out_ref.shape).astype(out_ref.dtype)

    return kernel


# ---------------------------------------------------------------------------
# Wrapper
# ---------------------------------------------------------------------------
def my_sel_ce(inputs, targets, weight=None, coverage=0.8, lam=32.0, tile_rows=None):
    """Pallas implementation of MySelCE.forward.

    inputs : (B, C+1) float — columns 0..C-1 are class logits, column C is the
             per-sample selection score (exactly the torch layout).  bf16/f16
             are streamed natively and upcast to f32 inside the kernel.
    targets: (B,) int indices; weight: optional (C,) class weights.
    Returns a shape-(1,) float32 array, like the torch module.
    """
    inputs = jnp.asarray(inputs)
    if not jnp.issubdtype(inputs.dtype, jnp.floating):
        inputs = inputs.astype(jnp.float32)
    B, Cp1 = inputs.shape
    C = Cp1 - 1

    tgt_flat = jnp.asarray(targets, jnp.int32).reshape(B)
    tgt = tgt_flat.reshape(B, 1)

    # Tiny wrapper-side gathers (B elements each) — keeps the per-element VPU
    # work in the hot loop down to mask / max / sub / exp / sum.
    xt = jnp.take_along_axis(inputs, tgt, axis=1)                     # (B, 1) target logits
    if weight is None:
        w_t = jnp.ones((B, 1), jnp.float32)                           # denom == B
    else:
        w_flat = jnp.asarray(weight, jnp.float32).reshape(-1)
        w_t = jnp.take(w_flat, tgt_flat).reshape(B, 1)

    # --- tiling ------------------------------------------------------------
    itemsize = inputs.dtype.itemsize
    try:
        vmem_cap = int(pltpu.get_tpu_info().vmem_capacity_bytes)
    except Exception:
        vmem_cap = 64 * 1024 * 1024
    # Per-buffer logits-tile budget: ~16 MiB on 128-MiB parts (v5e/v6e),
    # ~12 MiB on 64-MiB parts (v7x).  Double-buffered by the pipeline.
    budget = min(16 << 20, max(12 << 20, vmem_cap // 6))

    rows_pad = _round_up(B, 8)
    if tile_rows is None:
        tm = max(8, (budget // (Cp1 * itemsize)) // 8 * 8)
        tm = min(tm, rows_pad)
        # Keep >= 2 row tiles when the batch allows it so the "parallel" batch
        # axis can actually split across v7x's two TensorCores.
        if tm >= rows_pad and rows_pad >= 16:
            tm = _round_up(rows_pad // 2, 8)
    else:
        tm = max(8, _round_up(int(tile_rows), 8))
    num_tiles = (B + tm - 1) // tm

    tile_bytes = tm * Cp1 * itemsize
    vmem_limit = int(min(vmem_cap * 3 // 4, max(32 << 20, 3 * tile_bytes)))

    cost = pl.CostEstimate(
        flops=6 * B * Cp1,
        transcendentals=B * Cp1,
        bytes_accessed=B * Cp1 * itemsize + B * (itemsize + 4) + num_tiles * 128 * 4,
    )

    kernel = _make_selce_kernel(C, B, tm)
    parts = pl.pallas_call(
        kernel,
        out_shape=jax.ShapeDtypeStruct((num_tiles, 1, 128), jnp.float32),
        grid=(num_tiles,),
        in_specs=[
            pl.BlockSpec((tm, Cp1), lambda i: (i, 0)),   # raw inputs tile (native dtype)
            pl.BlockSpec((tm, 1), lambda i: (i, 0)),     # target logits
            pl.BlockSpec((tm, 1), lambda i: (i, 0)),     # weight[targets] (or ones)
        ],
        out_specs=pl.BlockSpec((1, 1, 128), lambda i: (i, 0, 0)),
        compiler_params=pltpu.CompilerParams(
            dimension_semantics=("parallel",),
            vmem_limit_bytes=vmem_limit,
        ),
        cost_estimate=cost,
    )(inputs, xt, w_t)

    # Scalar epilogue (a handful of flops) in plain JAX; keeps the grid fully
    # parallel and the finalize off the last tile's VALU path.
    totals = jnp.sum(parts, axis=(0, 1))                 # (128,) contiguous tiny reduce
    s_ce, s_selw, s_w = totals[0], totals[1], totals[2]
    # NOTE: divisions can be inf/nan if sum(sel) or sum(weight[targets]) ~ 0 —
    # same semantics as the PyTorch reference.
    ce_loss = s_ce / s_w
    emp_cov = s_selw / s_w
    lam_loss = lam * jnp.maximum(coverage - emp_cov, 0.0) ** 2
    return (ce_loss / emp_cov + lam_loss).reshape(1)


# ---------------------------------------------------------------------------
# Pure-JAX reference mirroring the PyTorch forward
# ---------------------------------------------------------------------------
def _reference(inputs, targets, weight=None, coverage=0.8, lam=32.0):
    inputs = jnp.asarray(inputs, jnp.float32)
    B = inputs.shape[0]
    in_pred = jax.nn.softmax(inputs[:, :-1], axis=1)
    ce = -jnp.log(in_pred[jnp.arange(B), targets]) * inputs[:, -1]
    if weight is not None:
        wt = weight[targets]
        ce_loss = jnp.sum(ce * wt) / jnp.sum(wt)
        emp_cov = jnp.sum(inputs[:, -1] * wt) / jnp.sum(wt)
    else:
        ce_loss = jnp.sum(ce) / B
        emp_cov = jnp.mean(inputs[:, -1])
    lam_loss = lam * jnp.maximum(coverage - emp_cov, 0.0) ** 2
    return (ce_loss / emp_cov + lam_loss).reshape(1)


if __name__ == "__main__":
    key = jax.random.PRNGKey(0)
    k_logit, k_sel, k_tgt, k_w = jax.random.split(key, 4)

    # 1) unweighted path, single tile, f32
    batch, num_classes = 8, 10
    logits = jax.random.normal(k_logit, (batch, num_classes), jnp.float32)
    sel = jax.random.uniform(k_sel, (batch, 1), jnp.float32, minval=0.2, maxval=1.0)
    inputs = jnp.concatenate([logits, sel], axis=1)          # (8, 11)
    targets = jax.random.randint(k_tgt, (batch,), 0, num_classes, jnp.int32)

    out = jax.block_until_ready(my_sel_ce(inputs, targets))
    ref = _reference(inputs, targets)
    np.testing.assert_allclose(np.asarray(out), np.asarray(ref), rtol=1e-5, atol=1e-5)

    # 2) weighted path, multiple batch tiles + partial (masked) last tile
    batch2 = 20
    logits2 = jax.random.normal(k_logit, (batch2, num_classes), jnp.float32)
    sel2 = jax.random.uniform(k_sel, (batch2, 1), jnp.float32, minval=0.2, maxval=1.0)
    inputs2 = jnp.concatenate([logits2, sel2], axis=1)       # (20, 11)
    targets2 = jax.random.randint(k_tgt, (batch2,), 0, num_classes, jnp.int32)
    weight = jax.random.uniform(k_w, (num_classes,), jnp.float32, minval=0.5, maxval=1.5)

    out2 = jax.block_until_ready(my_sel_ce(inputs2, targets2, weight=weight, tile_rows=8))
    ref2 = _reference(inputs2, targets2, weight=weight)
    np.testing.assert_allclose(np.asarray(out2), np.asarray(ref2), rtol=1e-5, atol=1e-5)

    # 3) bf16 inputs streamed natively (auto tiling -> 2 tiles, megacore split)
    inputs3 = inputs2.astype(jnp.bfloat16)
    out3 = jax.block_until_ready(my_sel_ce(inputs3, targets2))
    ref3 = _reference(inputs3.astype(jnp.float32), targets2)
    np.testing.assert_allclose(np.asarray(out3), np.asarray(ref3), rtol=5e-4, atol=1e-5)

    print("KERNEL_OK")
</pallas_src>

<mosaic_0001>
module attributes {stable_mosaic.version = 11 : i64} {
  func.func @kernel(%arg0: i32, %arg1: memref<8x11xf32, #tpu.memory_space<vmem>>, %arg2: memref<8x1xf32, #tpu.memory_space<vmem>>, %arg3: memref<8x1xf32, #tpu.memory_space<vmem>>, %arg4: memref<1x1x128xf32, #tpu.memory_space<vmem>>) attributes {dimension_semantics = [#tpu.dimension_semantics<parallel>], iteration_bounds = array<i64: 1>, scalar_prefetch = 0 : i64, scratch_operands = 0 : i64, tpu.core_type = #tpu.core_type<tc>, window_params = [{transform_indices = @transform_0, window_bounds = array<i64: 8, 11>}, {transform_indices = @transform_1, window_bounds = array<i64: 8, 1>}, {transform_indices = @transform_2, window_bounds = array<i64: 8, 1>}, {transform_indices = @transform_3, window_bounds = array<i64: 1, 1, 128>}]} {
    %c0 = arith.constant 0 : index
    %c0_0 = arith.constant 0 : index
    %0 = vector.load %arg1[%c0, %c0_0] : memref<8x11xf32, #tpu.memory_space<vmem>>, vector<8x11xf32>
    %c0_1 = arith.constant 0 : index
    %c0_2 = arith.constant 0 : index
    %1 = vector.load %arg2[%c0_1, %c0_2] : memref<8x1xf32, #tpu.memory_space<vmem>>, vector<8x1xf32>
    %c0_3 = arith.constant 0 : index
    %c0_4 = arith.constant 0 : index
    %2 = vector.load %arg3[%c0_3, %c0_4] : memref<8x1xf32, #tpu.memory_space<vmem>>, vector<8x1xf32>
    %3 = tpu.iota {dimensions = array<i32: 1>} : vector<8x11xi32>
    %c10_i32 = arith.constant 10 : i32
    %4 = vector.broadcast %c10_i32 : i32 to vector<8x11xi32>
    %5 = arith.cmpi slt, %3, %4 : vector<8x11xi32>
    %cst = arith.constant -1.000000e+30 : f32
    %6 = vector.broadcast %cst : f32 to vector<8x11xf32>
    %7 = arith.select %5, %0, %6 : vector<8x11xi1>, vector<8x11xf32>
    %cst_5 = arith.constant 0.000000e+00 : f32
    %8 = vector.broadcast %cst_5 : f32 to vector<8x11xf32>
    %9 = arith.select %5, %8, %0 : vector<8x11xi1>, vector<8x11xf32>
    %cst_6 = arith.constant dense<0.000000e+00> : vector<8xf32>
    %10 = vector.multi_reduction <add>, %9, %cst_6 [1] : vector<8x11xf32> to vector<8xf32>
    %11 = vector.shape_cast %10 : vector<8xf32> to vector<8x1xf32>
    %cst_7 = arith.constant dense<0xFF800000> : vector<8xf32>
    %12 = vector.multi_reduction <maximumf>, %7, %cst_7 [1] : vector<8x11xf32> to vector<8xf32>
    %13 = vector.shape_cast %12 : vector<8xf32> to vector<8x1xf32>
    %14 = vector.broadcast %13 : vector<8x1xf32> to vector<8x11xf32>
    %15 = arith.subf %7, %14 : vector<8x11xf32>
    %16 = math.exp %15 : vector<8x11xf32>
    %cst_8 = arith.constant dense<0.000000e+00> : vector<8xf32>
    %17 = vector.multi_reduction <add>, %16, %cst_8 [1] : vector<8x11xf32> to vector<8xf32>
    %18 = vector.shape_cast %17 : vector<8xf32> to vector<8x1xf32>
    %19 = math.log %18 : vector<8x1xf32>
    %20 = arith.subf %1, %13 : vector<8x1xf32>
    %21 = arith.subf %20, %19 : vector<8x1xf32>
    %c8_i32 = arith.constant 8 : i32
    %22 = arith.muli %arg0, %c8_i32 : i32
    %23 = tpu.iota {dimensions = array<i32: 0>} : vector<8x1xi32>
    %24 = vector.broadcast %22 : i32 to vector<8x1xi32>
    %25 = arith.addi %24, %23 : vector<8x1xi32>
    %c8_i32_9 = arith.constant 8 : i32
    %26 = vector.broadcast %c8_i32_9 : i32 to vector<8x1xi32>
    %27 = arith.cmpi slt, %25, %26 : vector<8x1xi32>
    %cst_10 = arith.constant 0.000000e+00 : f32
    %28 = vector.broadcast %cst_10 : f32 to vector<8x1xf32>
    %29 = arith.subf %28, %21 : vector<8x1xf32>
    %30 = arith.mulf %29, %11 : vector<8x1xf32>
    %31 = arith.mulf %30, %2 : vector<8x1xf32>
    %cst_11 = arith.constant 0.000000e+00 : f32
    %32 = vector.broadcast %cst_11 : f32 to vector<8x1xf32>
    %33 = arith.select %27, %31, %32 : vector<8x1xi1>, vector<8x1xf32>
    %34 = arith.mulf %11, %2 : vector<8x1xf32>
    %cst_12 = arith.constant 0.000000e+00 : f32
    %35 = vector.broadcast %cst_12 : f32 to vector<8x1xf32>
    %36 = arith.select %27, %34, %35 : vector<8x1xi1>, vector<8x1xf32>
    %cst_13 = arith.constant 0.000000e+00 : f32
    %37 = vector.broadcast %cst_13 : f32 to vector<8x1xf32>
    %38 = arith.select %27, %2, %37 : vector<8x1xi1>, vector<8x1xf32>
    %39 = vector.shape_cast %33 : vector<8x1xf32> to vector<1x8x1xf32>
    %cst_14 = arith.constant dense<0.000000e+00> : vector<1xf32>
    %40 = vector.multi_reduction <add>, %39, %cst_14 [1, 2] : vector<1x8x1xf32> to vector<1xf32>
    %41 = vector.shape_cast %40 : vector<1xf32> to vector<1x1x1xf32>
    %42 = vector.extract %41[0, 0, 0] : f32 from vector<1x1x1xf32>
    %43 = vector.shape_cast %36 : vector<8x1xf32> to vector<1x8x1xf32>
    %cst_15 = arith.constant dense<0.000000e+00> : vector<1xf32>
    %44 = vector.multi_reduction <add>, %43, %cst_15 [1, 2] : vector<1x8x1xf32> to vector<1xf32>
    %45 = vector.shape_cast %44 : vector<1xf32> to vector<1x1x1xf32>
    %46 = vector.extract %45[0, 0, 0] : f32 from vector<1x1x1xf32>
    %47 = vector.shape_cast %38 : vector<8x1xf32> to vector<1x8x1xf32>
    %cst_16 = arith.constant dense<0.000000e+00> : vector<1xf32>
    %48 = vector.multi_reduction <add>, %47, %cst_16 [1, 2] : vector<1x8x1xf32> to vector<1xf32>
    %49 = vector.shape_cast %48 : vector<1xf32> to vector<1x1x1xf32>
    %50 = vector.extract %49[0, 0, 0] : f32 from vector<1x1x1xf32>
    %51 = tpu.iota {dimensions = array<i32: 1>} : vector<1x128xi32>
    %c0_i32 = arith.constant 0 : i32
    %52 = vector.broadcast %c0_i32 : i32 to vector<1x128xi32>
    %53 = arith.cmpi eq, %51, %52 : vector<1x128xi32>
    %c1_i32 = arith.constant 1 : i32
    %54 = vector.broadcast %c1_i32 : i32 to vector<1x128xi32>
    %55 = arith.cmpi eq, %51, %54 : vector<1x128xi32>
    %c2_i32 = arith.constant 2 : i32
    %56 = vector.broadcast %c2_i32 : i32 to vector<1x128xi32>
    %57 = arith.cmpi eq, %51, %56 : vector<1x128xi32>
    %cst_17 = arith.constant 0.000000e+00 : f32
    %58 = vector.broadcast %50 : f32 to vector<1x128xf32>
    %59 = vector.broadcast %cst_17 : f32 to vector<1x128xf32>
    %60 = arith.select %57, %58, %59 : vector<1x128xi1>, vector<1x128xf32>
    %61 = vector.broadcast %46 : f32 to vector<1x128xf32>
    %62 = arith.select %55, %61, %60 : vector<1x128xi1>, vector<1x128xf32>
    %63 = vector.broadcast %42 : f32 to vector<1x128xf32>
    %64 = arith.select %53, %63, %62 : vector<1x128xi1>, vector<1x128xf32>
    %65 = vector.shape_cast %64 : vector<1x128xf32> to vector<1x1x128xf32>
    %c0_18 = arith.constant 0 : index
    %c0_19 = arith.constant 0 : index
    %c0_20 = arith.constant 0 : index
    %66 = vector.load %arg4[%c0_18, %c0_19, %c0_20] : memref<1x1x128xf32, #tpu.memory_space<vmem>>, vector<1x1x128xf32>
    tpu.vector_store %arg4[%c0_18, %c0_19, %c0_20], %65 {strides = array<i32>} : memref<1x1x128xf32, #tpu.memory_space<vmem>>, vector<1x1x128xf32>,
    return
  }
  func.func @transform_0(%arg0: i32) -> (i32, i32) {
    %c0_i32 = arith.constant 0 : i32
    %c0_i32_0 = arith.constant 0 : i32
    return %arg0, %c0_i32 : i32, i32
  }
  func.func @transform_1(%arg0: i32) -> (i32, i32) {
    %c0_i32 = arith.constant 0 : i32
    %c0_i32_0 = arith.constant 0 : i32
    return %arg0, %c0_i32 : i32, i32
  }
  func.func @transform_2(%arg0: i32) -> (i32, i32) {
    %c0_i32 = arith.constant 0 : i32
    %c0_i32_0 = arith.constant 0 : i32
    return %arg0, %c0_i32 : i32, i32
  }
  func.func @transform_3(%arg0: i32) -> (i32, i32, i32) {
    %c0_i32 = arith.constant 0 : i32
    %c0_i32_0 = arith.constant 0 : i32
    %c0_i32_1 = arith.constant 0 : i32
    return %arg0, %c0_i32, %c0_i32_0 : i32, i32, i32
  }
}

</mosaic_0001>

<llo_original>
// kernel: tpu_custom_call.1
$region0: #{tpu_custom_call.1}
  #allocation0 [shape = 'u32[]', space=smem, size = 0x4, offset = 0x4, fixed_abs, tag = 'smem constant byte address 0x4 - core index']
  #allocation1 [shape = 'u32[72,128]{1,0:T(1,128)}', space=vmem, size = 0x9000, scoped, tag = 'internal scratch']
  %s0 = inlined_call_operand.vmem [shape: f32[8,11], index: 0, kind: input, shape index: {}]
  %s1 = inlined_call_operand.vmem [shape: f32[8,1], index: 1, kind: input, shape index: {}]
  %s2 = inlined_call_operand.vmem [shape: f32[8,1], index: 2, kind: input, shape index: {}]
  %s3 = inlined_call_operand.hbm [shape: f32[1,1,128], index: 3, kind: output, shape index: {}]
  %s4 = sld [smem:[#allocation0]]
  $region22: #{tpu_custom_call.1} parent=0
    _
  %s6 = ssub.s32 1, %s4
  %s7 = scalar_select 0, %s6, %s4
  $region1: #{tpu_custom_call.1} parent=0
    #allocation2 [shape = 'u8[512]{0}', space=vmem, size = 0x400, scoped, tag = 'output window, operand 0, single buffered']
    #allocation3 [shape = 's32[1]{0}', space=sflag, size = 0x4, scoped, tag = 'scoped memory for tpu_custom_call.1']
    %8 = vsyncpa [#allocation3], 0
    // Predicated region
    $region2: #{tpu_custom_call.1} parent=1 // pred_check
      _
    $region3: #{tpu_custom_call.1} parent=1 // pred_check_branch
      %10 = sbr.rel (0) target = $region5
    $region4: #{tpu_custom_call.1} parent=1 // pred_region
      _
    $region5: #{tpu_custom_call.1} parent=1 // pred_fallthru
      _
    // Predicated region
    $region6: #{tpu_custom_call.1} parent=1 // pred_check
      _
    $region7: #{tpu_custom_call.1} parent=1 // pred_check_branch
      %12 = sbr.rel (0) target = $region9
    $region8: #{tpu_custom_call.1} parent=1 // pred_region
      _
    $region9: #{tpu_custom_call.1} parent=1 // pred_fallthru
      _
    // Predicated region
    $region10: #{tpu_custom_call.1} parent=1 // pred_check
      _
    $region11: #{tpu_custom_call.1} parent=1 // pred_check_branch
      %14 = sbr.rel (0) target = $region13
    $region12: #{tpu_custom_call.1} parent=1 // pred_region
      _
    $region13: #{tpu_custom_call.1} parent=1 // pred_fallthru
      _
    %v15 = vld [vmem:[%s0] sm:$0xff]
    %v16 = vld [vmem:[%s1] sm:$0xff]
    %v17 = vld [vmem:[%s2] sm:$0xff]
    %v18 = vlaneseq
    %v19 = vand.u32 %v18, 127
    %vm20 = vcmp.lt.s32.totalorder %v19, 10
    %v21 = vsel %vm20, %v15, -1e+30
    %v22 = vsel %vm20, 0.0, %v15
    %vm23 = vcmask 89088
    %v24 = vsel %vm23, %v22, 0.0
    %25 = vadd.xlane.f32.xlu0 %v24
    %v26 = vpop.xlane.xlu0 %25
    %v27 = vsel %vm23, %v21, -inf
    %28 = vmax.xlane.f32.xlu0 %v27
    %v29 = vpop.xlane.xlu0 %28
    %v30 = vsub.f32 %v21, %v29
    %v31 = vmul.f32 %v30, 1.442695
    %v32 = vpow.pop %v31
    %v33 = vsel %vm23, %v32, 0.0
    %34 = vadd.xlane.f32.xlu0 %v33
    %v35 = vpop.xlane.xlu0 %34
    %v36 = vlog2.pop %v35
    %v37 = vmul.f32 %v36, 0.6931472
    %v38 = vsub.f32 %v16, %v29
    %v39 = vsub.f32 %v38, %v37
    %s40 = smul.u32 0, 8
    %v41 = vlaneseq
    %v42 = vshrl.u32 %v41, 7
    %v43 = vstv %s40
    %v44 = vadd.s32 %v43, %v42
    %vm45 = vcmp.lt.s32.totalorder %v44, 8
    %v46 = vsub.f32 0.0, %v39
    %v47 = vmul.f32 %v46, %v26
    %v48 = vmul.f32 %v47, %v17
    %v49 = vsel %vm45, %v48, 0.0
    %v50 = vmul.f32 %v26, %v17
    %v51 = vsel %vm45, %v50, 0.0
    %v52 = vsel %vm45, %v17, 0.0
    %vm53 = vcmask 7168
    %v54 = vsel %vm53, %v49, 0.0
    %55 = vadd.xlane.f32.xlu0 %v54
    %v56 = vpop.xlane.xlu0 %55
    %v57 = vrot.slane %v56, 4
    %v58 = vadd.f32 %v56, %v57
    %v59 = vrot.slane %v58, 2
    %v60 = vadd.f32 %v58, %v59
    %v61 = vrot.slane %v60, 1
    %v62 = vadd.f32 %v60, %v61
    %s63 = vtos %v62
    %v64 = vsel %vm53, %v51, 0.0
    %65 = vadd.xlane.f32.xlu0 %v64
    %v66 = vpop.xlane.xlu0 %65
    %v67 = vrot.slane %v66, 4
    %v68 = vadd.f32 %v66, %v67
    %v69 = vrot.slane %v68, 2
    %v70 = vadd.f32 %v68, %v69
    %v71 = vrot.slane %v70, 1
    %v72 = vadd.f32 %v70, %v71
    %s73 = vtos %v72
    %v74 = vsel %vm53, %v52, 0.0
    %75 = vadd.xlane.f32.xlu0 %v74
    %v76 = vpop.xlane.xlu0 %75
    %v77 = vrot.slane %v76, 4
    %v78 = vadd.f32 %v76, %v77
    %v79 = vrot.slane %v78, 2
    %v80 = vadd.f32 %v78, %v79
    %v81 = vrot.slane %v80, 1
    %v82 = vadd.f32 %v80, %v81
    %s83 = vtos %v82
    %vm84 = vcmp.eq.s32.totalorder %v19, 0
    %vm85 = vcmp.eq.s32.totalorder %v19, 1
    %vm86 = vcmp.eq.s32.totalorder %v19, 2
    %v87 = vstv %s83
    %v88 = vsel %vm86, %v87, 0.0
    %v89 = vstv %s73
    %v90 = vsel %vm85, %v89, %v88
    %v91 = vstv %s63
    %v92 = vsel %vm84, %v91, %v90
    %93 = vst [vmem:[#allocation2] sm:$0x1] %v92
    // Predicated region
    $region14: #{tpu_custom_call.1} parent=1 // pred_check
      _
    $region15: #{tpu_custom_call.1} parent=1 // pred_check_branch
      %95 = sbr.rel (0) target = $region17
    $region16: #{tpu_custom_call.1} parent=1 // pred_region
      %97 = vsyncadd [#allocation3], 0
      %s99 = sshll.u32 [#allocation2], 4
      %s100 = int_to_ptr.vmem [resolvable:$true] %s99
      %s101 = sshll.u32 %s3, 4
      %s102 = int_to_ptr.hbm [resolvable:$true] %s101
      %104 = dma.vmem_to_hbm [thread:$0]  %s100, 16, %s102, [#allocation3]
    $region17: #{tpu_custom_call.1} parent=1 // pred_fallthru
      _
    // Predicated region
    $region18: #{tpu_custom_call.1} parent=1 // pred_check
      _
    $region19: #{tpu_custom_call.1} parent=1 // pred_check_branch
      %106 = sbr.rel (0) target = $region21
    $region20: #{tpu_custom_call.1} parent=1 // pred_region
      %108 = dma.done [#allocation3], 16
    $region21: #{tpu_custom_call.1} parent=1 // pred_fallthru
      _
    %109 = vsyncpa [#allocation3], 1

</llo_original>
